<compile_context>
chip_gen: v7x
topology: tpu7x:2x2x1
jax: 0.10.0
libtpu: 0.0.40
codegen_flags: <defaults>
</compile_context>

<pallas_src>
import functools

import jax
import jax.numpy as jnp
from jax.experimental import pallas as pl
from jax.experimental.pallas import tpu as pltpu

LOG_STD_MIN = -20.0
LOG_STD_MAX = 2.0

LANE = 128   # TPU lane width


def _round_up(n, m):
    return (n + m - 1) // m * m


def _pick_tb(batch):
    """Batch-tile rows per grid step.

    Small/rollout batches: a single tile sized to the batch (16-row
    granularity satisfies bf16 sublane packing for the output block).
    Training-size batches: 256 rows fill the 256-wide MXU M dimension on
    v6e/v7x, amortize per-step overhead, and give grid >= 2 (both v7x cores).
    On v5e (4x128^2 MXU) 256-row tiles still only buy overhead amortization,
    which is fine.
    """
    if batch <= 256:
        return _round_up(max(batch, 1), 16)
    return 256


def _actor_kernel(s_dim, state_ref, w1_ref, b1_ref, w2_ref, b2_ref,
                  whead_ref, bhead_ref, lo_ref, hi_ref, out_ref, xpad_ref):
    """One (TB, s_dim) raw-state tile -> one (TB, n_head) lane-dense bf16 slab."""
    # In-kernel feature pad (s_dim -> k_pad lanes) + bf16 cast: zero the f32
    # scratch, masked-store the raw state into its first s_dim columns.
    # Zeroing every step keeps correctness when the "parallel" batch axis is
    # split across TensorCores (each core has its own scratch).
    xpad_ref[...] = jnp.zeros_like(xpad_ref)
    xpad_ref[:, :s_dim] = state_ref[...]
    x = xpad_ref[...].astype(jnp.bfloat16)               # (TB, k_pad) bf16

    # fc1 + relu  (bf16 MXU operands, f32 accumulate / elementwise)
    h1 = jnp.dot(x, w1_ref[...], preferred_element_type=jnp.float32)
    h1 = jnp.maximum(h1 + b1_ref[...], 0.0)

    # fc2 + relu
    h2 = jnp.dot(h1.astype(jnp.bfloat16), w2_ref[...],
                 preferred_element_type=jnp.float32)
    h2 = jnp.maximum(h2 + b2_ref[...], 0.0)

    # fused heads: columns [0:A) = mu, [A:2A) = log_std, rest zero padding.
    head = jnp.dot(h2.astype(jnp.bfloat16), whead_ref[...],
                   preferred_element_type=jnp.float32) + bhead_ref[...]

    # per-column clamp: lo/hi are (+/-inf) on mu/pad columns,
    # (LOG_STD_MIN, LOG_STD_MAX) on log_std columns -> two VPU ops total.
    head = jnp.minimum(jnp.maximum(head, lo_ref[...]), hi_ref[...])

    out_ref[...] = head.astype(out_ref.dtype)


def prepare_params(params, state_dim, hidden_dim, action_dim):
    """One-time preprocessing: pad fc1 input features to 128 lanes, fuse the
    mu/log_std heads into one lane-padded weight, build per-column clamp
    bounds, cast MXU weights to bf16."""
    k_pad = _round_up(max(state_dim, 1), LANE)
    n_head = _round_up(2 * action_dim, LANE)

    w1 = jnp.zeros((k_pad, hidden_dim), jnp.float32).at[:state_dim].set(params["w1"])

    whead = jnp.zeros((hidden_dim, n_head), jnp.float32)
    whead = whead.at[:, :action_dim].set(params["wmu"])
    whead = whead.at[:, action_dim:2 * action_dim].set(params["wls"])

    bhead = jnp.zeros((1, n_head), jnp.float32)
    bhead = bhead.at[:, :action_dim].set(params["bmu"][0])
    bhead = bhead.at[:, action_dim:2 * action_dim].set(params["bls"][0])

    # per-column clamp bounds: only the log_std columns get finite bounds.
    lo = jnp.full((1, n_head), -jnp.inf, jnp.float32)
    lo = lo.at[:, action_dim:2 * action_dim].set(LOG_STD_MIN)
    hi = jnp.full((1, n_head), jnp.inf, jnp.float32)
    hi = hi.at[:, action_dim:2 * action_dim].set(LOG_STD_MAX)

    return dict(
        w1=w1.astype(jnp.bfloat16),
        b1=params["b1"].astype(jnp.float32),
        w2=params["w2"].astype(jnp.bfloat16),
        b2=params["b2"].astype(jnp.float32),
        whead=whead.astype(jnp.bfloat16),
        bhead=bhead,
        lo=lo,
        hi=hi,
    )


@functools.partial(jax.jit, static_argnames=("action_dim",))
def continuous_actor_forward(state, prepared, action_dim):
    """state: (B, state_dim) f32. prepared: output of prepare_params."""
    B, state_dim = state.shape
    k_pad, hidden = prepared["w1"].shape
    n_head = prepared["whead"].shape[1]

    tb = _pick_tb(B)
    b_pad = _round_up(B, tb)
    x = state if b_pad == B else jnp.pad(state, ((0, b_pad - B), (0, 0)))

    const = lambda i: (0, 0)  # weights/biases/bounds: same block every step

    flops = 2 * b_pad * (k_pad * hidden + hidden * hidden + hidden * n_head)
    bytes_accessed = (
        b_pad * state_dim * 4                                   # streamed state (f32)
        + (k_pad * hidden + hidden * hidden + hidden * n_head) * 2   # bf16 weights
        + (2 * hidden + 3 * n_head) * 4                         # biases + lo/hi (f32)
        + b_pad * n_head * 2)                                   # bf16 output slab

    out = pl.pallas_call(
        functools.partial(_actor_kernel, state_dim),
        out_shape=jax.ShapeDtypeStruct((b_pad, n_head), jnp.bfloat16),
        grid=(b_pad // tb,),
        in_specs=[
            pl.BlockSpec((tb, state_dim), lambda i: (i, 0)),   # raw state streams
            pl.BlockSpec((k_pad, hidden), const),
            pl.BlockSpec((1, hidden), const),
            pl.BlockSpec((hidden, hidden), const),
            pl.BlockSpec((1, hidden), const),
            pl.BlockSpec((hidden, n_head), const),
            pl.BlockSpec((1, n_head), const),
            pl.BlockSpec((1, n_head), const),
            pl.BlockSpec((1, n_head), const),
        ],
        out_specs=pl.BlockSpec((tb, n_head), lambda i: (i, 0)),
        scratch_shapes=[pltpu.VMEM((tb, k_pad), jnp.float32)],   # padded-state staging
        compiler_params=pltpu.CompilerParams(
            dimension_semantics=("parallel",)),
        cost_estimate=pl.CostEstimate(
            flops=flops, transcendentals=0, bytes_accessed=bytes_accessed),
    )(x, prepared["w1"], prepared["b1"], prepared["w2"], prepared["b2"],
      prepared["whead"], prepared["bhead"], prepared["lo"], prepared["hi"])

    mu = out[:B, :action_dim].astype(jnp.float32)
    log_std = out[:B, action_dim:2 * action_dim].astype(jnp.float32)
    return mu, log_std


def init_params(key, state_dim, action_dim, hidden_dim):
    """nn.Linear-style U(-1/sqrt(fan_in), 1/sqrt(fan_in)) init.
    Weights stored (in, out), i.e. pre-transposed vs. PyTorch."""
    def linear(k, fan_in, fan_out):
        kw, kb = jax.random.split(k)
        bound = 1.0 / jnp.sqrt(fan_in)
        w = jax.random.uniform(kw, (fan_in, fan_out), jnp.float32, -bound, bound)
        b = jax.random.uniform(kb, (1, fan_out), jnp.float32, -bound, bound)
        return w, b

    k1, k2, k3, k4 = jax.random.split(key, 4)
    w1, b1 = linear(k1, state_dim, hidden_dim)
    w2, b2 = linear(k2, hidden_dim, hidden_dim)
    wmu, bmu = linear(k3, hidden_dim, action_dim)
    wls, bls = linear(k4, hidden_dim, action_dim)
    return dict(w1=w1, b1=b1, w2=w2, b2=b2,
                wmu=wmu, bmu=bmu, wls=wls, bls=bls)


def reference_forward(state, params):
    """Pure-JAX reference with the same bf16-operand / f32-accumulate recipe."""
    def bf(a):
        return a.astype(jnp.bfloat16)
    h1 = jnp.maximum(
        jnp.dot(bf(state), bf(params["w1"]),
                preferred_element_type=jnp.float32) + params["b1"], 0.0)
    h2 = jnp.maximum(
        jnp.dot(bf(h1), bf(params["w2"]),
                preferred_element_type=jnp.float32) + params["b2"], 0.0)
    mu = jnp.dot(bf(h2), bf(params["wmu"]),
                 preferred_element_type=jnp.float32) + params["bmu"]
    ls = jnp.dot(bf(h2), bf(params["wls"]),
                 preferred_element_type=jnp.float32) + params["bls"]
    ls = jnp.clip(ls, LOG_STD_MIN, LOG_STD_MAX)
    return mu, ls


if __name__ == "__main__":
    # TODO(synk): sample()/get_action() (tanh-squashed Normal sampling) are not
    # implemented here; only the forward() pass is translated to Pallas.
    batch, state_dim, action_dim, hidden_dim = 37, 17, 6, 256

    key = jax.random.PRNGKey(0)
    k_params, k_state = jax.random.split(key)

    params = init_params(k_params, state_dim, action_dim, hidden_dim)
    prepared = prepare_params(params, state_dim, hidden_dim, action_dim)
    state = jax.random.normal(k_state, (batch, state_dim), jnp.float32)

    mu, log_std = continuous_actor_forward(state, prepared, action_dim)
    jax.block_until_ready((mu, log_std))

    mu_ref, ls_ref = reference_forward(state, params)
    assert mu.shape == (batch, action_dim) and log_std.shape == (batch, action_dim)
    # Output slab is written as bf16 (per review), so tolerance is one bf16 ulp
    # looser than the previous f32-output version.
    assert jnp.allclose(mu, mu_ref, atol=3e-2, rtol=3e-2), \
        float(jnp.max(jnp.abs(mu - mu_ref)))
    assert jnp.allclose(log_std, ls_ref, atol=3e-2, rtol=3e-2), \
        float(jnp.max(jnp.abs(log_std - ls_ref)))
    assert float(jnp.max(log_std)) <= LOG_STD_MAX
    assert float(jnp.min(log_std)) >= LOG_STD_MIN

    print("KERNEL_OK")
</pallas_src>

<mosaic_0001>
module attributes {stable_mosaic.version = 11 : i64} {
  func.func @_actor_kernel(%arg0: i32, %arg1: memref<48x17xf32, #tpu.memory_space<vmem>>, %arg2: memref<128x256xbf16, #tpu.memory_space<vmem>>, %arg3: memref<1x256xf32, #tpu.memory_space<vmem>>, %arg4: memref<256x256xbf16, #tpu.memory_space<vmem>>, %arg5: memref<1x256xf32, #tpu.memory_space<vmem>>, %arg6: memref<256x128xbf16, #tpu.memory_space<vmem>>, %arg7: memref<1x128xf32, #tpu.memory_space<vmem>>, %arg8: memref<1x128xf32, #tpu.memory_space<vmem>>, %arg9: memref<1x128xf32, #tpu.memory_space<vmem>>, %arg10: memref<48x128xbf16, #tpu.memory_space<vmem>>, %arg11: memref<48x128xf32, #tpu.memory_space<vmem>>) attributes {dimension_semantics = [#tpu.dimension_semantics<parallel>], iteration_bounds = array<i64: 1>, scalar_prefetch = 0 : i64, scratch_operands = 1 : i64, tpu.core_type = #tpu.core_type<tc>, window_params = [{transform_indices = @transform_0, window_bounds = array<i64: 48, 17>}, {pipeline_mode = #tpu.pipeline_mode<synchronous>, transform_indices = @transform_1, window_bounds = array<i64: 128, 256>}, {pipeline_mode = #tpu.pipeline_mode<synchronous>, transform_indices = @transform_2, window_bounds = array<i64: 1, 256>}, {pipeline_mode = #tpu.pipeline_mode<synchronous>, transform_indices = @transform_3, window_bounds = array<i64: 256, 256>}, {pipeline_mode = #tpu.pipeline_mode<synchronous>, transform_indices = @transform_4, window_bounds = array<i64: 1, 256>}, {pipeline_mode = #tpu.pipeline_mode<synchronous>, transform_indices = @transform_5, window_bounds = array<i64: 256, 128>}, {pipeline_mode = #tpu.pipeline_mode<synchronous>, transform_indices = @transform_6, window_bounds = array<i64: 1, 128>}, {pipeline_mode = #tpu.pipeline_mode<synchronous>, transform_indices = @transform_7, window_bounds = array<i64: 1, 128>}, {pipeline_mode = #tpu.pipeline_mode<synchronous>, transform_indices = @transform_8, window_bounds = array<i64: 1, 128>}, {transform_indices = @transform_9, window_bounds = array<i64: 48, 128>}]} {
    %cst = arith.constant 0.000000e+00 : f32
    %0 = vector.broadcast %cst : f32 to vector<48x128xf32>
    %c0 = arith.constant 0 : index
    %c0_0 = arith.constant 0 : index
    %1 = vector.load %arg11[%c0, %c0_0] : memref<48x128xf32, #tpu.memory_space<vmem>>, vector<48x128xf32>
    tpu.vector_store %arg11[%c0, %c0_0], %0 {strides = array<i32>} : memref<48x128xf32, #tpu.memory_space<vmem>>, vector<48x128xf32>,
    %c0_1 = arith.constant 0 : index
    %c0_2 = arith.constant 0 : index
    %2 = vector.load %arg1[%c0_1, %c0_2] : memref<48x17xf32, #tpu.memory_space<vmem>>, vector<48x17xf32>
    %c0_3 = arith.constant 0 : index
    %c0_4 = arith.constant 0 : index
    %3 = vector.load %arg11[%c0_3, %c0_4] : memref<48x128xf32, #tpu.memory_space<vmem>>, vector<48x17xf32>
    tpu.vector_store %arg11[%c0_3, %c0_4], %2 {strides = array<i32>} : memref<48x128xf32, #tpu.memory_space<vmem>>, vector<48x17xf32>,
    %c0_5 = arith.constant 0 : index
    %c0_6 = arith.constant 0 : index
    %4 = vector.load %arg11[%c0_5, %c0_6] : memref<48x128xf32, #tpu.memory_space<vmem>>, vector<48x128xf32>
    %5 = arith.truncf %4 : vector<48x128xf32> to vector<48x128xbf16>
    %c0_7 = arith.constant 0 : index
    %c0_8 = arith.constant 0 : index
    %6 = vector.load %arg2[%c0_7, %c0_8] : memref<128x256xbf16, #tpu.memory_space<vmem>>, vector<128x256xbf16>
    %cst_9 = arith.constant dense<0.000000e+00> : vector<48x256xf32>
    %7 = tpu.matmul %5, %6, %cst_9 {dimension_numbers = #tpu.dot_dimension_numbers<[1], [0], [0], [1], [0, 0, 1, 1], [], []>} : vector<48x128xbf16>, vector<128x256xbf16>, vector<48x256xf32> -> vector<48x256xf32>
    %c0_10 = arith.constant 0 : index
    %c0_11 = arith.constant 0 : index
    %8 = vector.load %arg3[%c0_10, %c0_11] : memref<1x256xf32, #tpu.memory_space<vmem>>, vector<1x256xf32>
    %9 = vector.broadcast %8 : vector<1x256xf32> to vector<48x256xf32>
    %10 = arith.addf %7, %9 : vector<48x256xf32>
    %cst_12 = arith.constant 0.000000e+00 : f32
    %11 = vector.broadcast %cst_12 : f32 to vector<48x256xf32>
    %12 = arith.maximumf %10, %11 : vector<48x256xf32>
    %13 = arith.truncf %12 : vector<48x256xf32> to vector<48x256xbf16>
    %c0_13 = arith.constant 0 : index
    %c0_14 = arith.constant 0 : index
    %14 = vector.load %arg4[%c0_13, %c0_14] : memref<256x256xbf16, #tpu.memory_space<vmem>>, vector<256x256xbf16>
    %cst_15 = arith.constant dense<0.000000e+00> : vector<48x256xf32>
    %15 = tpu.matmul %13, %14, %cst_15 {dimension_numbers = #tpu.dot_dimension_numbers<[1], [0], [0], [1], [0, 0, 1, 1], [], []>} : vector<48x256xbf16>, vector<256x256xbf16>, vector<48x256xf32> -> vector<48x256xf32>
    %c0_16 = arith.constant 0 : index
    %c0_17 = arith.constant 0 : index
    %16 = vector.load %arg5[%c0_16, %c0_17] : memref<1x256xf32, #tpu.memory_space<vmem>>, vector<1x256xf32>
    %17 = vector.broadcast %16 : vector<1x256xf32> to vector<48x256xf32>
    %18 = arith.addf %15, %17 : vector<48x256xf32>
    %cst_18 = arith.constant 0.000000e+00 : f32
    %19 = vector.broadcast %cst_18 : f32 to vector<48x256xf32>
    %20 = arith.maximumf %18, %19 : vector<48x256xf32>
    %21 = arith.truncf %20 : vector<48x256xf32> to vector<48x256xbf16>
    %c0_19 = arith.constant 0 : index
    %c0_20 = arith.constant 0 : index
    %22 = vector.load %arg6[%c0_19, %c0_20] : memref<256x128xbf16, #tpu.memory_space<vmem>>, vector<256x128xbf16>
    %cst_21 = arith.constant dense<0.000000e+00> : vector<48x128xf32>
    %23 = tpu.matmul %21, %22, %cst_21 {dimension_numbers = #tpu.dot_dimension_numbers<[1], [0], [0], [1], [0, 0, 1, 1], [], []>} : vector<48x256xbf16>, vector<256x128xbf16>, vector<48x128xf32> -> vector<48x128xf32>
    %c0_22 = arith.constant 0 : index
    %c0_23 = arith.constant 0 : index
    %24 = vector.load %arg7[%c0_22, %c0_23] : memref<1x128xf32, #tpu.memory_space<vmem>>, vector<1x128xf32>
    %25 = vector.broadcast %24 : vector<1x128xf32> to vector<48x128xf32>
    %26 = arith.addf %23, %25 : vector<48x128xf32>
    %c0_24 = arith.constant 0 : index
    %c0_25 = arith.constant 0 : index
    %27 = vector.load %arg8[%c0_24, %c0_25] : memref<1x128xf32, #tpu.memory_space<vmem>>, vector<1x128xf32>
    %28 = vector.broadcast %27 : vector<1x128xf32> to vector<48x128xf32>
    %29 = arith.maximumf %26, %28 : vector<48x128xf32>
    %c0_26 = arith.constant 0 : index
    %c0_27 = arith.constant 0 : index
    %30 = vector.load %arg9[%c0_26, %c0_27] : memref<1x128xf32, #tpu.memory_space<vmem>>, vector<1x128xf32>
    %31 = vector.broadcast %30 : vector<1x128xf32> to vector<48x128xf32>
    %32 = arith.minimumf %29, %31 : vector<48x128xf32>
    %33 = arith.truncf %32 : vector<48x128xf32> to vector<48x128xbf16>
    %c0_28 = arith.constant 0 : index
    %c0_29 = arith.constant 0 : index
    %34 = vector.load %arg10[%c0_28, %c0_29] : memref<48x128xbf16, #tpu.memory_space<vmem>>, vector<48x128xbf16>
    tpu.vector_store %arg10[%c0_28, %c0_29], %33 {strides = array<i32>} : memref<48x128xbf16, #tpu.memory_space<vmem>>, vector<48x128xbf16>,
    return
  }
  func.func @transform_0(%arg0: i32) -> (i32, i32) {
    %c0_i32 = arith.constant 0 : i32
    %c0_i32_0 = arith.constant 0 : i32
    return %arg0, %c0_i32 : i32, i32
  }
  func.func @transform_1(%arg0: i32) -> (i32, i32) {
    %c0_i32 = arith.constant 0 : i32
    %c0_i32_0 = arith.constant 0 : i32
    %c0_i32_1 = arith.constant 0 : i32
    return %c0_i32, %c0_i32_0 : i32, i32
  }
  func.func @transform_2(%arg0: i32) -> (i32, i32) {
    %c0_i32 = arith.constant 0 : i32
    %c0_i32_0 = arith.constant 0 : i32
    %c0_i32_1 = arith.constant 0 : i32
    return %c0_i32, %c0_i32_0 : i32, i32
  }
  func.func @transform_3(%arg0: i32) -> (i32, i32) {
    %c0_i32 = arith.constant 0 : i32
    %c0_i32_0 = arith.constant 0 : i32
    %c0_i32_1 = arith.constant 0 : i32
    return %c0_i32, %c0_i32_0 : i32, i32
  }
  func.func @transform_4(%arg0: i32) -> (i32, i32) {
    %c0_i32 = arith.constant 0 : i32
    %c0_i32_0 = arith.constant 0 : i32
    %c0_i32_1 = arith.constant 0 : i32
    return %c0_i32, %c0_i32_0 : i32, i32
  }
  func.func @transform_5(%arg0: i32) -> (i32, i32) {
    %c0_i32 = arith.constant 0 : i32
    %c0_i32_0 = arith.constant 0 : i32
    %c0_i32_1 = arith.constant 0 : i32
    return %c0_i32, %c0_i32_0 : i32, i32
  }
  func.func @transform_6(%arg0: i32) -> (i32, i32) {
    %c0_i32 = arith.constant 0 : i32
    %c0_i32_0 = arith.constant 0 : i32
    %c0_i32_1 = arith.constant 0 : i32
    return %c0_i32, %c0_i32_0 : i32, i32
  }
  func.func @transform_7(%arg0: i32) -> (i32, i32) {
    %c0_i32 = arith.constant 0 : i32
    %c0_i32_0 = arith.constant 0 : i32
    %c0_i32_1 = arith.constant 0 : i32
    return %c0_i32, %c0_i32_0 : i32, i32
  }
  func.func @transform_8(%arg0: i32) -> (i32, i32) {
    %c0_i32 = arith.constant 0 : i32
    %c0_i32_0 = arith.constant 0 : i32
    %c0_i32_1 = arith.constant 0 : i32
    return %c0_i32, %c0_i32_0 : i32, i32
  }
  func.func @transform_9(%arg0: i32) -> (i32, i32) {
    %c0_i32 = arith.constant 0 : i32
    %c0_i32_0 = arith.constant 0 : i32
    return %arg0, %c0_i32 : i32, i32
  }
}

</mosaic_0001>

<llo_original>
// kernel: continuous_actor_forward.1
$region0: #{continuous_actor_forward.1}
  #allocation0 [shape = 'u32[]', space=smem, size = 0x4, offset = 0x4, fixed_abs, tag = 'smem constant byte address 0x4 - core index']
  #allocation1 [shape = 'u32[144,128]{1,0:T(1,128)}', space=vmem, size = 0x12000, scoped, tag = 'internal scratch']
  #allocation2 [shape = 'f32[48,128]{1,0:T(8,128)}', space=vmem, size = 0x6000, scoped, tag = 'scratch operand']
  %s0 = inlined_call_operand.vmem [shape: f32[48,17], index: 0, kind: input, shape index: {}]
  %s1 = inlined_call_operand.vmem [shape: bf16[128,256], index: 1, kind: input, shape index: {}]
  %s2 = inlined_call_operand.vmem [shape: f32[1,256], index: 2, kind: input, shape index: {}]
  %s3 = inlined_call_operand.hbm [shape: bf16[256,256], index: 3, kind: input, shape index: {}]
  %s4 = inlined_call_operand.vmem [shape: f32[1,256], index: 4, kind: input, shape index: {}]
  %s5 = inlined_call_operand.hbm [shape: bf16[256,128], index: 5, kind: input, shape index: {}]
  %s6 = inlined_call_operand.vmem [shape: f32[1,128], index: 6, kind: input, shape index: {}]
  %s7 = inlined_call_operand.vmem [shape: f32[1,128], index: 7, kind: input, shape index: {}]
  %s8 = inlined_call_operand.vmem [shape: f32[1,128], index: 8, kind: input, shape index: {}]
  %s9 = inlined_call_operand.vmem [shape: bf16[48,128], index: 9, kind: output, shape index: {}]
  %s10 = sld [smem:[#allocation0]]
  $region54: #{continuous_actor_forward.1} parent=0
    _
  %s12 = ssub.s32 1, %s10
  %s13 = scalar_select 0, %s12, %s10
  $region1: #{continuous_actor_forward.1} parent=0
    #allocation3 [shape = 'u8[131072]{0}', space=vmem, size = 0x20000, scoped, tag = 'input window, operand 3, single buffered']
    #allocation4 [shape = 's32[1]{0}', space=sflag, size = 0x4, scoped, tag = 'scoped memory for continuous_actor_forward.1']
    #allocation5 [shape = 'u8[65536]{0}', space=vmem, size = 0x10000, scoped, tag = 'input window, operand 5, single buffered']
    #allocation6 [shape = 's32[1]{0}', space=sflag, size = 0x4, scoped, tag = 'scoped memory for continuous_actor_forward.1']
    %14 = vsyncpa [#allocation4], 0
    %15 = vsyncpa [#allocation6], 0
    // Predicated region
    $region2: #{continuous_actor_forward.1} parent=1 // pred_check
      _
    $region3: #{continuous_actor_forward.1} parent=1 // pred_check_branch
      %17 = sbr.rel (0) target = $region5
    $region4: #{continuous_actor_forward.1} parent=1 // pred_region
      _
    $region5: #{continuous_actor_forward.1} parent=1 // pred_fallthru
      _
    // Predicated region
    $region6: #{continuous_actor_forward.1} parent=1 // pred_check
      _
    $region7: #{continuous_actor_forward.1} parent=1 // pred_check_branch
      %19 = sbr.rel (0) target = $region9
    $region8: #{continuous_actor_forward.1} parent=1 // pred_region
      _
    $region9: #{continuous_actor_forward.1} parent=1 // pred_fallthru
      _
    // Predicated region
    $region10: #{continuous_actor_forward.1} parent=1 // pred_check
      _
    $region11: #{continuous_actor_forward.1} parent=1 // pred_check_branch
      %21 = sbr.rel (0) target = $region13
    $region12: #{continuous_actor_forward.1} parent=1 // pred_region
      _
    $region13: #{continuous_actor_forward.1} parent=1 // pred_fallthru
      _
    // Predicated region
    $region14: #{continuous_actor_forward.1} parent=1 // pred_check
      _
    $region15: #{continuous_actor_forward.1} parent=1 // pred_check_branch
      %23 = sbr.rel (0) target = $region17
    $region16: #{continuous_actor_forward.1} parent=1 // pred_region
      %s25 = ssub.s32 4096, 4096
      %26 = vsyncadd [#allocation4], %s25
      %s27 = sshll.u32 [#allocation3], 4
      %s28 = int_to_ptr.vmem [resolvable:$true] %s27
      %33 = dma.hbm_to_vmem [thread:$0]  %s3, 4096, %s28, [#allocation4], 128, 128, 8
    $region17: #{continuous_actor_forward.1} parent=1 // pred_fallthru
      _
    // Predicated region
    $region18: #{continuous_actor_forward.1} parent=1 // pred_check
      _
    $region19: #{continuous_actor_forward.1} parent=1 // pred_check_branch
      %35 = sbr.rel (0) target = $region21
    $region20: #{continuous_actor_forward.1} parent=1 // pred_region
      _
    $region21: #{continuous_actor_forward.1} parent=1 // pred_fallthru
      _
    // Predicated region
    $region22: #{continuous_actor_forward.1} parent=1 // pred_check
      _
    $region23: #{continuous_actor_forward.1} parent=1 // pred_check_branch
      %37 = sbr.rel (0) target = $region25
    $region24: #{continuous_actor_forward.1} parent=1 // pred_region
      %s39 = ssub.s32 2048, 2048
      %40 = vsyncadd [#allocation6], %s39
      %s41 = sshll.u32 [#allocation5], 4
      %s42 = int_to_ptr.vmem [resolvable:$true] %s41
      %47 = dma.hbm_to_vmem [thread:$0]  %s5, 2048, %s42, [#allocation6], 64, 64, 4
    $region25: #{continuous_actor_forward.1} parent=1 // pred_fallthru
      _
    // Predicated region
    $region26: #{continuous_actor_forward.1} parent=1 // pred_check
      _
    $region27: #{continuous_actor_forward.1} parent=1 // pred_check_branch
      %49 = sbr.rel (0) target = $region29
    $region28: #{continuous_actor_forward.1} parent=1 // pred_region
      _
    $region29: #{continuous_actor_forward.1} parent=1 // pred_fallthru
      _
    // Predicated region
    $region30: #{continuous_actor_forward.1} parent=1 // pred_check
      _
    $region31: #{continuous_actor_forward.1} parent=1 // pred_check_branch
      %51 = sbr.rel (0) target = $region33
    $region32: #{continuous_actor_forward.1} parent=1 // pred_region
      _
    $region33: #{continuous_actor_forward.1} parent=1 // pred_fallthru
      _
    // Predicated region
    $region34: #{continuous_actor_forward.1} parent=1 // pred_check
      _
    $region35: #{continuous_actor_forward.1} parent=1 // pred_check_branch
      %53 = sbr.rel (0) target = $region37
    $region36: #{continuous_actor_forward.1} parent=1 // pred_region
      _
    $region37: #{continuous_actor_forward.1} parent=1 // pred_fallthru
      _
    // Predicated region
    $region38: #{continuous_actor_forward.1} parent=1 // pred_check
      _
    $region39: #{continuous_actor_forward.1} parent=1 // pred_check_branch
      %55 = sbr.rel (0) target = $region41
    $region40: #{continuous_actor_forward.1} parent=1 // pred_region
      %56 = dma.done [#allocation4], 4096
    $region41: #{continuous_actor_forward.1} parent=1 // pred_fallthru
      _
    // Predicated region
    $region42: #{continuous_actor_forward.1} parent=1 // pred_check
      _
    $region43: #{continuous_actor_forward.1} parent=1 // pred_check_branch
      %58 = sbr.rel (0) target = $region45
    $region44: #{continuous_actor_forward.1} parent=1 // pred_region
      %59 = dma.done [#allocation6], 2048
    $region45: #{continuous_actor_forward.1} parent=1 // pred_fallthru
      _
    %61 = vst [vmem:[#allocation2] sm:$0xff] 0.0
    %62 = vst [vmem:[#allocation2 + $0x8] sm:$0xff] 0.0
    %63 = vst [vmem:[#allocation2 + $0x10] sm:$0xff] 0.0
    %64 = vst [vmem:[#allocation2 + $0x18] sm:$0xff] 0.0
    %65 = vst [vmem:[#allocation2 + $0x20] sm:$0xff] 0.0
    %66 = vst [vmem:[#allocation2 + $0x28] sm:$0xff] 0.0
    %v67 = vld [vmem:[%s0] sm:$0xff]
    %v68 = vld [vmem:[%s0 + $0x8] sm:$0xff]
    %v69 = vld [vmem:[%s0 + $0x10] sm:$0xff]
    %v70 = vld [vmem:[%s0 + $0x18] sm:$0xff]
    %v71 = vld [vmem:[%s0 + $0x20] sm:$0xff]
    %v72 = vld [vmem:[%s0 + $0x28] sm:$0xff]
    %vm73 = vcmask 138240
    %74 = vst.msk [vmem:[#allocation2] sm:$0xff] %vm73, %v67
    %75 = vst.msk [vmem:[#allocation2 + $0x8] sm:$0xff] %vm73, %v68
    %76 = vst.msk [vmem:[#allocation2 + $0x10] sm:$0xff] %vm73, %v69
    %77 = vst.msk [vmem:[#allocation2 + $0x18] sm:$0xff] %vm73, %v70
    %78 = vst.msk [vmem:[#allocation2 + $0x20] sm:$0xff] %vm73, %v71
    %79 = vst.msk [vmem:[#allocation2 + $0x28] sm:$0xff] %vm73, %v72
    %v80 = vld [vmem:[#allocation2] sm:$0xff]
    %v81 = vld [vmem:[#allocation2 + $0x8] sm:$0xff]
    %v82 = vld [vmem:[#allocation2 + $0x10] sm:$0xff]
    %v83 = vld [vmem:[#allocation2 + $0x18] sm:$0xff]
    %v84 = vld [vmem:[#allocation2 + $0x20] sm:$0xff]
    %v85 = vld [vmem:[#allocation2 + $0x28] sm:$0xff]
    %v86 = vpack.c.bf16 %v81, %v80
    %v87 = vpack.c.bf16 %v83, %v82
    %v88 = vpack.c.bf16 %v85, %v84
    %v89 = vld [vmem:[%s1] sm:$0xff]
    %v90 = vld [vmem:[%s1 + $0x8] sm:$0xff]
    %v91 = vld [vmem:[%s1 + $0x10] sm:$0xff]
    %v92 = vld [vmem:[%s1 + $0x18] sm:$0xff]
    %v93 = vld [vmem:[%s1 + $0x20] sm:$0xff]
    %v94 = vld [vmem:[%s1 + $0x28] sm:$0xff]
    %v95 = vld [vmem:[%s1 + $0x30] sm:$0xff]
    %v96 = vld [vmem:[%s1 + $0x38] sm:$0xff]
    %v97 = vld [vmem:[%s1 + $0x40] sm:$0xff]
    %v98 = vld [vmem:[%s1 + $0x48] sm:$0xff]
    %v99 = vld [vmem:[%s1 + $0x50] sm:$0xff]
    %v100 = vld [vmem:[%s1 + $0x58] sm:$0xff]
    %v101 = vld [vmem:[%s1 + $0x60] sm:$0xff]
    %v102 = vld [vmem:[%s1 + $0x68] sm:$0xff]
    %v103 = vld [vmem:[%s1 + $0x70] sm:$0xff]
    %v104 = vld [vmem:[%s1 + $0x78] sm:$0xff]
    %v105 = vld [vmem:[%s2] sm:$0x3]
    %v107 = vlaneseq
    %v108 = vshrl.u32 %v107, 7
    %v109 = vsub.s32 0, %v108
    %v110 = vrot.slane %v105, %v109
    %v111 = vlaneseq
    %v112 = vshrl.u32 %v111, 7
    %v113 = vsub.s32 1, %v112
    %v114 = vrot.slane %v105, %v113
    %v133 = vunpack.c.l.b16 %v89
    %v134 = vunpack.c.h.b16 %v89
    %v135 = vunpack.c.l.b16 %v90
    %v136 = vunpack.c.h.b16 %v90
    %v137 = vunpack.c.l.b16 %v91
    %v138 = vunpack.c.h.b16 %v91
    %v139 = vunpack.c.l.b16 %v92
    %v140 = vunpack.c.h.b16 %v92
    %v141 = vunpack.c.l.b16 %v93
    %v142 = vunpack.c.h.b16 %v93
    %v143 = vunpack.c.l.b16 %v94
    %v144 = vunpack.c.h.b16 %v94
    %v145 = vunpack.c.l.b16 %v95
    %v146 = vunpack.c.h.b16 %v95
    %v147 = vunpack.c.l.b16 %v96
    %v148 = vunpack.c.h.b16 %v96
    %v149 = vunpack.c.l.b16 %v97
    %v150 = vunpack.c.h.b16 %v97
    %v151 = vunpack.c.l.b16 %v98
    %v152 = vunpack.c.h.b16 %v98
    %v153 = vunpack.c.l.b16 %v99
    %v154 = vunpack.c.h.b16 %v99
    %v155 = vunpack.c.l.b16 %v100
    %v156 = vunpack.c.h.b16 %v100
    %v157 = vunpack.c.l.b16 %v101
    %v158 = vunpack.c.h.b16 %v101
    %v159 = vunpack.c.l.b16 %v102
    %v160 = vunpack.c.h.b16 %v102
    %v161 = vunpack.c.l.b16 %v103
    %v162 = vunpack.c.h.b16 %v103
    %v163 = vunpack.c.l.b16 %v104
    %v164 = vunpack.c.h.b16 %v104
    %v165 = vpack.c.b16 %v135, %v133
    %v166 = vpack.c.b16 %v136, %v134
    %v167 = vpack.c.b16 %v139, %v137
    %v168 = vpack.c.b16 %v140, %v138
    %v169 = vpack.c.b16 %v143, %v141
    %v170 = vpack.c.b16 %v144, %v142
    %v171 = vpack.c.b16 %v147, %v145
    %v172 = vpack.c.b16 %v148, %v146
    %v173 = vpack.c.b16 %v151, %v149
    %v174 = vpack.c.b16 %v152, %v150
    %v175 = vpack.c.b16 %v155, %v153
    %v176 = vpack.c.b16 %v156, %v154
    %v177 = vpack.c.b16 %v159, %v157
    %v178 = vpack.c.b16 %v160, %v158
    %v179 = vpack.c.b16 %v163, %v161
    %v180 = vpack.c.b16 %v164, %v162
    %197 = vmatprep.subr.bf16.mxu0 %v166
    %198 = vmatpush1.bf16.msra.mxu0 %v165
    %199 = vmatprep.subr.bf16.mxu0 %v168
    %200 = vmatpush1.bf16.msra.mxu0 %v167
    %201 = vmatprep.subr.bf16.mxu0 %v170
    %202 = vmatpush1.bf16.msra.mxu0 %v169
    %203 = vmatprep.subr.bf16.mxu0 %v172
    %204 = vmatpush1.bf16.msra.mxu0 %v171
    %205 = vmatprep.subr.bf16.mxu0 %v174
    %206 = vmatpush1.bf16.msra.mxu0 %v173
    %207 = vmatprep.subr.bf16.mxu0 %v176
    %208 = vmatpush1.bf16.msra.mxu0 %v175
    %209 = vmatprep.subr.bf16.mxu0 %v178
    %210 = vmatpush1.bf16.msra.mxu0 %v177
    %211 = vmatprep.subr.bf16.mxu0 %v180
    %212 = vmatpush1.bf16.msra.mxu0 %v179
    %213 = vmatprep.subr.bf16.mxu0 0
    %214 = vmatpush1.bf16.msra.mxu0 0
    %215 = vmatprep.subr.bf16.mxu0 0
    %216 = vmatpush1.bf16.msra.mxu0 0
    %217 = vmatprep.subr.bf16.mxu0 0
    %218 = vmatpush1.bf16.msra.mxu0 0
    %219 = vmatprep.subr.bf16.mxu0 0
    %220 = vmatpush1.bf16.msra.mxu0 0
    %221 = vmatprep.subr.bf16.mxu0 0
    %222 = vmatpush1.bf16.msra.mxu0 0
    %223 = vmatprep.subr.bf16.mxu0 0
    %224 = vmatpush1.bf16.msra.mxu0 0
    %225 = vmatprep.subr.bf16.mxu0 0
    %226 = vmatpush1.bf16.msra.mxu0 0
    %227 = vmatprep.subr.bf16.mxu0 0
    %228 = vmatpush1.bf16.msra.mxu0 0
    %229 = vmatprep.mubr.bf16.mxu0 0
    %230 = vmatmul.mubr.bf16.gmra.mrb[0].mxu0 %v86
    %v231 = vpop.f32.mrb[0].mxu0
    %v232 = vadd.f32 %v110, %v231
    %v233 = vpop.f32.mrb[0].mxu0
    %v234 = vadd.f32 %v114, %v233
    %v235 = vpop.f32.mrb[0].mxu0
    %v236 = vadd.f32 %v110, %v235
    %v237 = vpop.f32.mrb[0].mxu0
    %v238 = vadd.f32 %v114, %v237
    %239 = vmatprep.mubr.bf16.mxu0 0
    %240 = vmatmul.mubr.bf16.gmra.mrb[0].mxu0 %v87
    %v241 = vpop.f32.mrb[0].mxu0
    %v242 = vadd.f32 %v110, %v241
    %v243 = vpop.f32.mrb[0].mxu0
    %v244 = vadd.f32 %v114, %v243
    %v245 = vpop.f32.mrb[0].mxu0
    %v246 = vadd.f32 %v110, %v245
    %v247 = vpop.f32.mrb[0].mxu0
    %v248 = vadd.f32 %v114, %v247
    %249 = vmatprep.mubr.bf16.mxu0 0
    %250 = vmatmul.mubr.bf16.gmra.mrb[0].mxu0 %v88
    %v251 = vpop.f32.mrb[0].mxu0
    %v252 = vadd.f32 %v110, %v251
    %v253 = vpop.f32.mrb[0].mxu0
    %v254 = vadd.f32 %v114, %v253
    %v255 = vpop.f32.mrb[0].mxu0
    %v256 = vadd.f32 %v110, %v255
    %v257 = vpop.f32.mrb[0].mxu0
    %v258 = vadd.f32 %v114, %v257
    %259 = vdwg.mxu0
    %v260 = vmax.f32 %v232, 0.0
    %v261 = vmax.f32 %v234, 0.0
    %v262 = vmax.f32 %v236, 0.0
    %v263 = vmax.f32 %v238, 0.0
    %v264 = vmax.f32 %v242, 0.0
    %v265 = vmax.f32 %v244, 0.0
    %v266 = vmax.f32 %v246, 0.0
    %v267 = vmax.f32 %v248, 0.0
    %v268 = vmax.f32 %v252, 0.0
    %v269 = vmax.f32 %v254, 0.0
    %v270 = vmax.f32 %v256, 0.0
    %v271 = vmax.f32 %v258, 0.0
    %v272 = vpack.c.bf16 %v262, %v260
    %v273 = vpack.c.bf16 %v263, %v261
    %v274 = vpack.c.bf16 %v266, %v264
    %v275 = vpack.c.bf16 %v267, %v265
    %v276 = vpack.c.bf16 %v270, %v268
    %v277 = vpack.c.bf16 %v271, %v269
    %v278 = vld [vmem:[#allocation3] sm:$0xff]
    %v279 = vld [vmem:[#allocation3 + $0x8] sm:$0xff]
    %v280 = vld [vmem:[#allocation3 + $0x10] sm:$0xff]
    %v281 = vld [vmem:[#allocation3 + $0x18] sm:$0xff]
    %v282 = vld [vmem:[#allocation3 + $0x20] sm:$0xff]
    %v283 = vld [vmem:[#allocation3 + $0x28] sm:$0xff]
    %v284 = vld [vmem:[#allocation3 + $0x30] sm:$0xff]
    %v285 = vld [vmem:[#allocation3 + $0x38] sm:$0xff]
    %v286 = vld [vmem:[#allocation3 + $0x40] sm:$0xff]
    %v287 = vld [vmem:[#allocation3 + $0x48] sm:$0xff]
    %v288 = vld [vmem:[#allocation3 + $0x50] sm:$0xff]
    %v289 = vld [vmem:[#allocation3 + $0x58] sm:$0xff]
    %v290 = vld [vmem:[#allocation3 + $0x60] sm:$0xff]
    %v291 = vld [vmem:[#allocation3 + $0x68] sm:$0xff]
    %v292 = vld [vmem:[#allocation3 + $0x70] sm:$0xff]
    %v293 = vld [vmem:[#allocation3 + $0x78] sm:$0xff]
    %v294 = vld [vmem:[#allocation3 + $0x80] sm:$0xff]
    %v295 = vld [vmem:[#allocation3 + $0x88] sm:$0xff]
    %v296 = vld [vmem:[#allocation3 + $0x90] sm:$0xff]
    %v297 = vld [vmem:[#allocation3 + $0x98] sm:$0xff]
    %v298 = vld [vmem:[#allocation3 + $0xa0] sm:$0xff]
    %v299 = vld [vmem:[#allocation3 + $0xa8] sm:$0xff]
    %v300 = vld [vmem:[#allocation3 + $0xb0] sm:$0xff]
    %v301 = vld [vmem:[#allocation3 + $0xb8] sm:$0xff]
    %v302 = vld [vmem:[#allocation3 + $0xc0] sm:$0xff]
    %v303 = vld [vmem:[#allocation3 + $0xc8] sm:$0xff]
    %v304 = vld [vmem:[#allocation3 + $0xd0] sm:$0xff]
    %v305 = vld [vmem:[#allocation3 + $0xd8] sm:$0xff]
    %v306 = vld [vmem:[#allocation3 + $0xe0] sm:$0xff]
    %v307 = vld [vmem:[#allocation3 + $0xe8] sm:$0xff]
    %v308 = vld [vmem:[#allocation3 + $0xf0] sm:$0xff]
    %v309 = vld [vmem:[#allocation3 + $0xf8] sm:$0xff]
    %v310 = vld [vmem:[%s4] sm:$0x3]
    %v312 = vlaneseq
    %v313 = vshrl.u32 %v312, 7
    %v314 = vsub.s32 0, %v313
    %v315 = vrot.slane %v310, %v314
    %v316 = vlaneseq
    %v317 = vshrl.u32 %v316, 7
    %v318 = vsub.s32 1, %v317
    %v319 = vrot.slane %v310, %v318
    %v354 = vunpack.c.l.b16 %v278
    %v355 = vunpack.c.h.b16 %v278
    %v356 = vunpack.c.l.b16 %v279
    %v357 = vunpack.c.h.b16 %v279
    %v358 = vunpack.c.l.b16 %v280
    %v359 = vunpack.c.h.b16 %v280
    %v360 = vunpack.c.l.b16 %v281
    %v361 = vunpack.c.h.b16 %v281
    %v362 = vunpack.c.l.b16 %v282
    %v363 = vunpack.c.h.b16 %v282
    %v364 = vunpack.c.l.b16 %v283
    %v365 = vunpack.c.h.b16 %v283
    %v366 = vunpack.c.l.b16 %v284
    %v367 = vunpack.c.h.b16 %v284
    %v368 = vunpack.c.l.b16 %v285
    %v369 = vunpack.c.h.b16 %v285
    %v370 = vunpack.c.l.b16 %v286
    %v371 = vunpack.c.h.b16 %v286
    %v372 = vunpack.c.l.b16 %v287
    %v373 = vunpack.c.h.b16 %v287
    %v374 = vunpack.c.l.b16 %v288
    %v375 = vunpack.c.h.b16 %v288
    %v376 = vunpack.c.l.b16 %v289
    %v377 = vunpack.c.h.b16 %v289
    %v378 = vunpack.c.l.b16 %v290
    %v379 = vunpack.c.h.b16 %v290
    %v380 = vunpack.c.l.b16 %v291
    %v381 = vunpack.c.h.b16 %v291
    %v382 = vunpack.c.l.b16 %v292
    %v383 = vunpack.c.h.b16 %v292
    %v384 = vunpack.c.l.b16 %v293
    %v385 = vunpack.c.h.b16 %v293
    %v386 = vunpack.c.l.b16 %v294
    %v387 = vunpack.c.h.b16 %v294
    %v388 = vunpack.c.l.b16 %v295
    %v389 = vunpack.c.h.b16 %v295
    %v390 = vunpack.c.l.b16 %v296
    %v391 = vunpack.c.h.b16 %v296
    %v392 = vunpack.c.l.b16 %v297
    %v393 = vunpack.c.h.b16 %v297
    %v394 = vunpack.c.l.b16 %v298
    %v395 = vunpack.c.h.b16 %v298
    %v396 = vunpack.c.l.b16 %v299
    %v397 = vunpack.c.h.b16 %v299
    %v398 = vunpack.c.l.b16 %v300
    %v399 = vunpack.c.h.b16 %v300
    %v400 = vunpack.c.l.b16 %v301
    %v401 = vunpack.c.h.b16 %v301
    %v402 = vunpack.c.l.b16 %v302
    %v403 = vunpack.c.h.b16 %v302
    %v404 = vunpack.c.l.b16 %v303
    %v405 = vunpack.c.h.b16 %v303
    %v406 = vunpack.c.l.b16 %v304
    %v407 = vunpack.c.h.b16 %v304
    %v408 = vunpack.c.l.b16 %v305
    %v409 = vunpack.c.h.b16 %v305
    %v410 = vunpack.c.l.b16 %v306
    %v411 = vunpack.c.h.b16 %v306
    %v412 = vunpack.c.l.b16 %v307
    %v413 = vunpack.c.h.b16 %v307
    %v414 = vunpack.c.l.b16 %v308
    %v415 = vunpack.c.h.b16 %v308
    %v416 = vunpack.c.l.b16 %v309
    %v417 = vunpack.c.h.b16 %v309
    %v418 = vpack.c.b16 %v356, %v354
    %v419 = vpack.c.b16 %v357, %v355
    %v420 = vpack.c.b16 %v360, %v358
    %v421 = vpack.c.b16 %v361, %v359
    %v422 = vpack.c.b16 %v364, %v362
    %v423 = vpack.c.b16 %v365, %v363
    %v424 = vpack.c.b16 %v368, %v366
    %v425 = vpack.c.b16 %v369, %v367
    %v426 = vpack.c.b16 %v372, %v370
    %v427 = vpack.c.b16 %v373, %v371
    %v428 = vpack.c.b16 %v376, %v374
    %v429 = vpack.c.b16 %v377, %v375
    %v430 = vpack.c.b16 %v380, %v378
    %v431 = vpack.c.b16 %v381, %v379
    %v432 = vpack.c.b16 %v384, %v382
    %v433 = vpack.c.b16 %v385, %v383
    %v434 = vpack.c.b16 %v388, %v386
    %v435 = vpack.c.b16 %v389, %v387
    %v436 = vpack.c.b16 %v392, %v390
    %v437 = vpack.c.b16 %v393, %v391
    %v438 = vpack.c.b16 %v396, %v394
    %v439 = vpack.c.b16 %v397, %v395
    %v440 = vpack.c.b16 %v400, %v398
    %v441 = vpack.c.b16 %v401, %v399
    %v442 = vpack.c.b16 %v404, %v402
    %v443 = vpack.c.b16 %v405, %v403
    %v444 = vpack.c.b16 %v408, %v406
    %v445 = vpack.c.b16 %v409, %v407
    %v446 = vpack.c.b16 %v412, %v410
    %v447 = vpack.c.b16 %v413, %v411
    %v448 = vpack.c.b16 %v416, %v414
    %v449 = vpack.c.b16 %v417, %v415
    %482 = vmatprep.subr.bf16.mxu0 %v419
    %483 = vmatpush1.bf16.msra.mxu0 %v418
    %484 = vmatprep.subr.bf16.mxu0 %v421
    %485 = vmatpush1.bf16.msra.mxu0 %v420
    %486 = vmatprep.subr.bf16.mxu0 %v423
    %487 = vmatpush1.bf16.msra.mxu0 %v422
    %488 = vmatprep.subr.bf16.mxu0 %v425
    %489 = vmatpush1.bf16.msra.mxu0 %v424
    %490 = vmatprep.subr.bf16.mxu0 %v427
    %491 = vmatpush1.bf16.msra.mxu0 %v426
    %492 = vmatprep.subr.bf16.mxu0 %v429
    %493 = vmatpush1.bf16.msra.mxu0 %v428
    %494 = vmatprep.subr.bf16.mxu0 %v431
    %495 = vmatpush1.bf16.msra.mxu0 %v430
    %496 = vmatprep.subr.bf16.mxu0 %v433
    %497 = vmatpush1.bf16.msra.mxu0 %v432
    %498 = vmatprep.subr.bf16.mxu0 %v435
    %499 = vmatpush1.bf16.msra.mxu0 %v434
    %500 = vmatprep.subr.bf16.mxu0 %v437
    %501 = vmatpush1.bf16.msra.mxu0 %v436
    %502 = vmatprep.subr.bf16.mxu0 %v439
    %503 = vmatpush1.bf16.msra.mxu0 %v438
    %504 = vmatprep.subr.bf16.mxu0 %v441
    %505 = vmatpush1.bf16.msra.mxu0 %v440
    %506 = vmatprep.subr.bf16.mxu0 %v443
    %507 = vmatpush1.bf16.msra.mxu0 %v442
    %508 = vmatprep.subr.bf16.mxu0 %v445
    %509 = vmatpush1.bf16.msra.mxu0 %v444
    %510 = vmatprep.subr.bf16.mxu0 %v447
    %511 = vmatpush1.bf16.msra.mxu0 %v446
    %512 = vmatprep.subr.bf16.mxu0 %v449
    %513 = vmatpush1.bf16.msra.mxu0 %v448
    %514 = vmatprep.mubr.bf16.mxu0 %v273
    %515 = vmatmul.mubr.bf16.gmra.mrb[0].mxu0 %v272
    %v516 = vpop.f32.mrb[0].mxu0
    %v517 = vadd.f32 %v315, %v516
    %v518 = vpop.f32.mrb[0].mxu0
    %v519 = vadd.f32 %v319, %v518
    %v520 = vpop.f32.mrb[0].mxu0
    %v521 = vadd.f32 %v315, %v520
    %v522 = vpop.f32.mrb[0].mxu0
    %v523 = vadd.f32 %v319, %v522
    %524 = vmatprep.mubr.bf16.mxu0 %v275
    %525 = vmatmul.mubr.bf16.gmra.mrb[0].mxu0 %v274
    %v526 = vpop.f32.mrb[0].mxu0
    %v527 = vadd.f32 %v315, %v526
    %v528 = vpop.f32.mrb[0].mxu0
    %v529 = vadd.f32 %v319, %v528
    %v530 = vpop.f32.mrb[0].mxu0
    %v531 = vadd.f32 %v315, %v530
    %v532 = vpop.f32.mrb[0].mxu0
    %v533 = vadd.f32 %v319, %v532
    %534 = vmatprep.mubr.bf16.mxu0 %v277
    %535 = vmatmul.mubr.bf16.gmra.mrb[0].mxu0 %v276
    %v536 = vpop.f32.mrb[0].mxu0
    %v537 = vadd.f32 %v315, %v536
    %v538 = vpop.f32.mrb[0].mxu0
    %v539 = vadd.f32 %v319, %v538
    %v540 = vpop.f32.mrb[0].mxu0
    %v541 = vadd.f32 %v315, %v540
    %v542 = vpop.f32.mrb[0].mxu0
    %v543 = vadd.f32 %v319, %v542
    %544 = vdwg.mxu0
    %v545 = vmax.f32 %v517, 0.0
    %v546 = vmax.f32 %v519, 0.0
    %v547 = vmax.f32 %v521, 0.0
    %v548 = vmax.f32 %v523, 0.0
    %v549 = vmax.f32 %v527, 0.0
    %v550 = vmax.f32 %v529, 0.0
    %v551 = vmax.f32 %v531, 0.0
    %v552 = vmax.f32 %v533, 0.0
    %v553 = vmax.f32 %v537, 0.0
    %v554 = vmax.f32 %v539, 0.0
    %v555 = vmax.f32 %v541, 0.0
    %v556 = vmax.f32 %v543, 0.0
    %v557 = vpack.c.bf16 %v547, %v545
    %v558 = vpack.c.bf16 %v548, %v546
    %v559 = vpack.c.bf16 %v551, %v549
    %v560 = vpack.c.bf16 %v552, %v550
    %v561 = vpack.c.bf16 %v555, %v553
    %v562 = vpack.c.bf16 %v556, %v554
    %v563 = vld [vmem:[#allocation5] sm:$0xf]
    %v564 = vld [vmem:[#allocation5 + $0x4] sm:$0xf]
    %v565 = vld [vmem:[#allocation5 + $0x8] sm:$0xf]
    %v566 = vld [vmem:[#allocation5 + $0xc] sm:$0xf]
    %v567 = vld [vmem:[#allocation5 + $0x10] sm:$0xf]
    %v568 = vld [vmem:[#allocation5 + $0x14] sm:$0xf]
    %v569 = vld [vmem:[#allocation5 + $0x18] sm:$0xf]
    %v570 = vld [vmem:[#allocation5 + $0x1c] sm:$0xf]
    %v571 = vld [vmem:[#allocation5 + $0x20] sm:$0xf]
    %v572 = vld [vmem:[#allocation5 + $0x24] sm:$0xf]
    %v573 = vld [vmem:[#allocation5 + $0x28] sm:$0xf]
    %v574 = vld [vmem:[#allocation5 + $0x2c] sm:$0xf]
    %v575 = vld [vmem:[#allocation5 + $0x30] sm:$0xf]
    %v576 = vld [vmem:[#allocation5 + $0x34] sm:$0xf]
    %v577 = vld [vmem:[#allocation5 + $0x38] sm:$0xf]
    %v578 = vld [vmem:[#allocation5 + $0x3c] sm:$0xf]
    %v579 = vld [vmem:[#allocation5 + $0x40] sm:$0xf]
    %v580 = vld [vmem:[#allocation5 + $0x44] sm:$0xf]
    %v581 = vld [vmem:[#allocation5 + $0x48] sm:$0xf]
    %v582 = vld [vmem:[#allocation5 + $0x4c] sm:$0xf]
    %v583 = vld [vmem:[#allocation5 + $0x50] sm:$0xf]
    %v584 = vld [vmem:[#allocation5 + $0x54] sm:$0xf]
    %v585 = vld [vmem:[#allocation5 + $0x58] sm:$0xf]
    %v586 = vld [vmem:[#allocation5 + $0x5c] sm:$0xf]
    %v587 = vld [vmem:[#allocation5 + $0x60] sm:$0xf]
    %v588 = vld [vmem:[#allocation5 + $0x64] sm:$0xf]
    %v589 = vld [vmem:[#allocation5 + $0x68] sm:$0xf]
    %v590 = vld [vmem:[#allocation5 + $0x6c] sm:$0xf]
    %v591 = vld [vmem:[#allocation5 + $0x70] sm:$0xf]
    %v592 = vld [vmem:[#allocation5 + $0x74] sm:$0xf]
    %v593 = vld [vmem:[#allocation5 + $0x78] sm:$0xf]
    %v594 = vld [vmem:[#allocation5 + $0x7c] sm:$0xf]
    %v595 = vld [vmem:[%s6] sm:$0x1]
    %v597 = vlaneseq
    %v598 = vshrl.u32 %v597, 7
    %v599 = vsub.s32 0, %v598
    %v600 = vrot.slane %v595, %v599
    %v634 = vunpack.c.l.b16 %v563
    %v635 = vunpack.c.l.b16 %v564
    %v636 = vunpack.c.l.b16 %v565
    %v637 = vunpack.c.l.b16 %v566
    %v638 = vunpack.c.l.b16 %v567
    %v639 = vunpack.c.l.b16 %v568
    %v640 = vunpack.c.l.b16 %v569
    %v641 = vunpack.c.l.b16 %v570
    %v642 = vunpack.c.l.b16 %v571
    %v643 = vunpack.c.l.b16 %v572
    %v644 = vunpack.c.l.b16 %v573
    %v645 = vunpack.c.l.b16 %v574
    %v646 = vunpack.c.l.b16 %v575
    %v647 = vunpack.c.l.b16 %v576
    %v648 = vunpack.c.l.b16 %v577
    %v649 = vunpack.c.l.b16 %v578
    %v650 = vunpack.c.l.b16 %v579
    %v651 = vunpack.c.l.b16 %v580
    %v652 = vunpack.c.l.b16 %v581
    %v653 = vunpack.c.l.b16 %v582
    %v654 = vunpack.c.l.b16 %v583
    %v655 = vunpack.c.l.b16 %v584
    %v656 = vunpack.c.l.b16 %v585
    %v657 = vunpack.c.l.b16 %v586
    %v658 = vunpack.c.l.b16 %v587
    %v659 = vunpack.c.l.b16 %v588
    %v660 = vunpack.c.l.b16 %v589
    %v661 = vunpack.c.l.b16 %v590
    %v662 = vunpack.c.l.b16 %v591
    %v663 = vunpack.c.l.b16 %v592
    %v664 = vunpack.c.l.b16 %v593
    %v665 = vunpack.c.l.b16 %v594
    %v666 = vpack.c.b16 %v635, %v634
    %v667 = vpack.c.b16 %v637, %v636
    %v668 = vpack.c.b16 %v639, %v638
    %v669 = vpack.c.b16 %v641, %v640
    %v670 = vpack.c.b16 %v643, %v642
    %v671 = vpack.c.b16 %v645, %v644
    %v672 = vpack.c.b16 %v647, %v646
    %v673 = vpack.c.b16 %v649, %v648
    %v674 = vpack.c.b16 %v651, %v650
    %v675 = vpack.c.b16 %v653, %v652
    %v676 = vpack.c.b16 %v655, %v654
    %v677 = vpack.c.b16 %v657, %v656
    %v678 = vpack.c.b16 %v659, %v658
    %v679 = vpack.c.b16 %v661, %v660
    %v680 = vpack.c.b16 %v663, %v662
    %v681 = vpack.c.b16 %v665, %v664
    %698 = vmatprep.subr.bf16.mxu0 0
    %699 = vmatpush1.bf16.msra.mxu0 %v666
    %700 = vmatprep.subr.bf16.mxu0 0
    %701 = vmatpush1.bf16.msra.mxu0 %v667
    %702 = vmatprep.subr.bf16.mxu0 0
    %703 = vmatpush1.bf16.msra.mxu0 %v668
    %704 = vmatprep.subr.bf16.mxu0 0
    %705 = vmatpush1.bf16.msra.mxu0 %v669
    %706 = vmatprep.subr.bf16.mxu0 0
    %707 = vmatpush1.bf16.msra.mxu0 %v670
    %708 = vmatprep.subr.bf16.mxu0 0
    %709 = vmatpush1.bf16.msra.mxu0 %v671
    %710 = vmatprep.subr.bf16.mxu0 0
    %711 = vmatpush1.bf16.msra.mxu0 %v672
    %712 = vmatprep.subr.bf16.mxu0 0
    %713 = vmatpush1.bf16.msra.mxu0 %v673
    %714 = vmatprep.subr.bf16.mxu0 0
    %715 = vmatpush1.bf16.msra.mxu0 %v674
    %716 = vmatprep.subr.bf16.mxu0 0
    %717 = vmatpush1.bf16.msra.mxu0 %v675
    %718 = vmatprep.subr.bf16.mxu0 0
    %719 = vmatpush1.bf16.msra.mxu0 %v676
    %720 = vmatprep.subr.bf16.mxu0 0
    %721 = vmatpush1.bf16.msra.mxu0 %v677
    %722 = vmatprep.subr.bf16.mxu0 0
    %723 = vmatpush1.bf16.msra.mxu0 %v678
    %724 = vmatprep.subr.bf16.mxu0 0
    %725 = vmatpush1.bf16.msra.mxu0 %v679
    %726 = vmatprep.subr.bf16.mxu0 0
    %727 = vmatpush1.bf16.msra.mxu0 %v680
    %728 = vmatprep.subr.bf16.mxu0 0
    %729 = vmatpush1.bf16.msra.mxu0 %v681
    %730 = vmatprep.mubr.bf16.mxu0 %v558
    %731 = vmatmul.mubr.bf16.gmra.mrb[0].mxu0 %v557
    %v732 = vpop.f32.mrb[0].mxu0
    %v733 = vadd.f32 %v600, %v732
    %v734 = vpop.f32.mrb[0].mxu0
    %v735 = vpop.f32.mrb[0].mxu0
    %v736 = vadd.f32 %v600, %v735
    %v737 = vpop.f32.mrb[0].mxu0
    %738 = vmatprep.mubr.bf16.mxu0 %v560
    %739 = vmatmul.mubr.bf16.gmra.mrb[0].mxu0 %v559
    %v740 = vpop.f32.mrb[0].mxu0
    %v741 = vadd.f32 %v600, %v740
    %v742 = vpop.f32.mrb[0].mxu0
    %v743 = vpop.f32.mrb[0].mxu0
    %v744 = vadd.f32 %v600, %v743
    %v745 = vpop.f32.mrb[0].mxu0
    %746 = vmatprep.mubr.bf16.mxu0 %v562
    %747 = vmatmul.mubr.bf16.gmra.mrb[0].mxu0 %v561
    %v748 = vpop.f32.mrb[0].mxu0
    %v749 = vadd.f32 %v600, %v748
    %v750 = vpop.f32.mrb[0].mxu0
    %v751 = vpop.f32.mrb[0].mxu0
    %v752 = vadd.f32 %v600, %v751
    %v753 = vpop.f32.mrb[0].mxu0
    %754 = vdwg.mxu0
    %v755 = vld [vmem:[%s7] sm:$0x1]
    %v757 = vlaneseq
    %v758 = vshrl.u32 %v757, 7
    %v759 = vsub.s32 0, %v758
    %v760 = vrot.slane %v755, %v759
    %v762 = vmax.f32 %v733, %v760
    %v763 = vmax.f32 %v736, %v760
    %v764 = vmax.f32 %v741, %v760
    %v765 = vmax.f32 %v744, %v760
    %v766 = vmax.f32 %v749, %v760
    %v767 = vmax.f32 %v752, %v760
    %v768 = vld [vmem:[%s8] sm:$0x1]
    %v770 = vlaneseq
    %v771 = vshrl.u32 %v770, 7
    %v772 = vsub.s32 0, %v771
    %v773 = vrot.slane %v768, %v772
    %v775 = vmin.f32 %v762, %v773
    %v776 = vmin.f32 %v763, %v773
    %v777 = vmin.f32 %v764, %v773
    %v778 = vmin.f32 %v765, %v773
    %v779 = vmin.f32 %v766, %v773
    %v780 = vmin.f32 %v767, %v773
    %v781 = vpack.c.bf16 %v776, %v775
    %v782 = vpack.c.bf16 %v778, %v777
    %v783 = vpack.c.bf16 %v780, %v779
    %v787 = vunpack.c.l.b16 %v781
    %v788 = vunpack.c.h.b16 %v781
    %v789 = vunpack.c.l.b16 %v782
    %v790 = vunpack.c.h.b16 %v782
    %v791 = vunpack.c.l.b16 %v783
    %v792 = vunpack.c.h.b16 %v783
    %v793 = vpack.c.b16 %v787, %v787
    %v794 = vpack.c.b16 %v788, %v788
    %v795 = vpack.c.b16 %v789, %v789
    %v796 = vpack.c.b16 %v790, %v790
    %v797 = vpack.c.b16 %v791, %v791
    %v798 = vpack.c.b16 %v792, %v792
    %805 = vst [vmem:[%s9] sm:$0xf] %v793
    %806 = vst [vmem:[%s9 + $0x4] sm:$0xf] %v794
    %807 = vst [vmem:[%s9 + $0x8] sm:$0xf] %v795
    %808 = vst [vmem:[%s9 + $0xc] sm:$0xf] %v796
    %809 = vst [vmem:[%s9 + $0x10] sm:$0xf] %v797
    %810 = vst [vmem:[%s9 + $0x14] sm:$0xf] %v798
    // Predicated region
    $region46: #{continuous_actor_forward.1} parent=1 // pred_check
      _
    $region47: #{continuous_actor_forward.1} parent=1 // pred_check_branch
      %812 = sbr.rel (0) target = $region49
    $region48: #{continuous_actor_forward.1} parent=1 // pred_region
      _
    $region49: #{continuous_actor_forward.1} parent=1 // pred_fallthru
      _
    // Predicated region
    $region50: #{continuous_actor_forward.1} parent=1 // pred_check
      _
    $region51: #{continuous_actor_forward.1} parent=1 // pred_check_branch
      %814 = sbr.rel (0) target = $region53
    $region52: #{continuous_actor_forward.1} parent=1 // pred_region
      _
    $region53: #{continuous_actor_forward.1} parent=1 // pred_fallthru
      _
    %815 = vsyncpa [#allocation4], 1
    %816 = vsyncpa [#allocation6], 1

</llo_original>
